<compile_context>
chip_gen: v5e
topology: v5e:2x2
jax: 0.10.0
libtpu: 0.0.40
codegen_flags: <defaults>
</compile_context>

<pallas_src>
import functools

import jax
import jax.numpy as jnp
from jax import lax
from jax.experimental import pallas as pl
from jax.experimental.pallas import tpu as pltpu

_LANE = 128


# --------------------------------------------------------------------------- #
# Hardware probes / small helpers
# --------------------------------------------------------------------------- #
def _num_tensorcores():
    """Best-effort TensorCore count of the local device (v7x: 2, v5e/v6e: 1)."""
    candidates = []
    try:
        candidates.append(jax.devices()[0])
    except Exception:
        pass
    try:
        candidates.append(pltpu.get_tpu_info())
    except Exception:
        pass
    for obj in candidates:
        for attr in ("num_cores", "core_count", "num_tensorcores", "tensor_cores"):
            v = getattr(obj, attr, None)
            if v is None:
                continue
            try:
                v = int(v)
            except (TypeError, ValueError):
                continue
            if 1 <= v <= 16:
                return v
    # Unknown: default to 2.  On single-TC chips an extra (serial) partition is
    # essentially free; missing the split on a 2-TC part halves streaming BW.
    return 2


def _vmem_limits():
    """Returns (vmem_limit_bytes for the compiler, per-step working-set budget)."""
    cap = 0
    try:
        cap = int(getattr(pltpu.get_tpu_info(), "vmem_capacity_bytes", 0))
    except Exception:
        cap = 0
    if cap <= 0:
        cap = 64 * 1024 * 1024          # conservative default (v7x per-TC VMEM)
    limit = max(32 * 1024 * 1024, min((cap * 7) // 10, 96 * 1024 * 1024))
    return limit, limit // 2


def _largest_divisor_leq(n, cap):
    cap = max(1, min(n, cap))
    for d in range(cap, 0, -1):
        if n % d == 0:
            return d
    return 1


# --------------------------------------------------------------------------- #
# Kernels
# --------------------------------------------------------------------------- #
def _dice_dense_kernel(x_ref, y_ref, num_ref, den_ref, *,
                       st, s_total, ktp, split_spatial, needs_mask):
    """Dense path: blocks (bt, C, st, 128); accumulates (C, 128) per partition."""
    p = pl.program_id(0)
    n = pl.program_id(1)
    k = pl.program_id(2)

    @pl.when((n == 0) & (k == 0))
    def _init():
        num_ref[...] = jnp.zeros_like(num_ref)
        den_ref[...] = jnp.zeros_like(den_ref)

    x = x_ref[...].astype(jnp.float32)          # (bt, C, st, 128)
    y = y_ref[...].astype(jnp.float32)

    def _accumulate(xv, yv):
        # Sublane + batch reduce goes to XLU / cheap vreg adds; lanes stay dense.
        num_ref[...] += jnp.sum(xv * yv, axis=(0, 2))
        den_ref[...] += jnp.sum(xv * xv + yv * yv, axis=(0, 2))

    if not needs_mask:
        _accumulate(x, y)
    else:
        gk = p * ktp + k if split_spatial else k
        ragged = (gk + 1) * st > s_total        # true only for boundary tiles

        @pl.when(jnp.logical_not(ragged))
        def _full():
            _accumulate(x, y)

        @pl.when(ragged)
        def _masked():
            row = lax.broadcasted_iota(jnp.int32, x.shape, 2)
            m = row < (s_total - gk * st)
            _accumulate(jnp.where(m, x, 0.0), jnp.where(m, y, 0.0))


def _dice_lane_kernel(x_ref, y_ref, num_ref, den_ref, *,
                      ktb, k_total, kt, needs_mask):
    """Ragged-lane path: blocks (bt, C, ktb) over the unpadded flattened axis."""
    n = pl.program_id(1)
    k = pl.program_id(2)

    @pl.when((n == 0) & (k == 0))
    def _init():
        num_ref[...] = jnp.zeros_like(num_ref)
        den_ref[...] = jnp.zeros_like(den_ref)

    x = x_ref[...].astype(jnp.float32)          # (bt, C, ktb)
    y = y_ref[...].astype(jnp.float32)

    def _accumulate(xv, yv):
        num_ref[...] += jnp.sum(xv * yv, axis=(0, 2))[None, :]
        den_ref[...] += jnp.sum(xv * xv + yv * yv, axis=(0, 2))[None, :]

    if not needs_mask:
        _accumulate(x, y)
    else:
        @pl.when(k < kt - 1)
        def _full():
            _accumulate(x, y)

        @pl.when(k == kt - 1)
        def _masked():
            lane = lax.broadcasted_iota(jnp.int32, x.shape, 2)
            m = lane < (k_total - k * ktb)
            _accumulate(jnp.where(m, x, 0.0), jnp.where(m, y, 0.0))


# --------------------------------------------------------------------------- #
# Wrappers
# --------------------------------------------------------------------------- #
def _dense_partial_sums(x4, y4, p_req, max_rows_per_block, vmem_limit, budget):
    """Per-channel sum(x*y) and sum(x*x+y*y) for (N, C, S, 128) inputs."""
    n_batch, c, s, lane = x4.shape
    x_isz = jnp.dtype(x4.dtype).itemsize
    y_isz = jnp.dtype(y4.dtype).itemsize
    packing = max(1, 4 // x_isz, 4 // y_isz)
    min_sub = 8 * packing                       # sublane alignment (dtype-aware)

    # Partition across TensorCores: over batch when it divides, otherwise over
    # the spatial-tile axis; collapse when there is nothing to split.
    split_spatial = False
    if p_req > 1 and n_batch % p_req == 0:
        n_parts, nbp = p_req, n_batch // p_req
    elif p_req > 1:
        split_spatial, n_parts, nbp = True, p_req, n_batch
    else:
        n_parts, nbp = 1, n_batch

    # Per-step working set per (batch, spatial-row) unit: two inputs, double
    # buffered, plus headroom for the f32-cast / product temporaries.
    per_elem = 2 * (x_isz + y_isz) + 12
    unit_bytes = c * lane * per_elem
    max_units = max(min_sub, budget // unit_bytes)
    # NOTE: very large C (C*min_sub rows exceeding the budget) would want an
    # extra channel-tiling grid axis; not needed for typical segmentation C.

    st_cap = s if max_rows_per_block is None else max(1, min(s, int(max_rows_per_block)))
    if st_cap >= s and max_units >= s:
        st = s                                   # whole spatial extent per block
        bt = _largest_divisor_leq(nbp, max(1, max_units // s))
    else:
        bt = 1
        st = max(1, min(st_cap, max_units))
        if st < s:
            st = max(min_sub, (st // min_sub) * min_sub)
            st = min(st, s)
    kt_total = -(-s // st)

    if split_spatial and kt_total < n_parts:
        split_spatial, n_parts = False, 1        # nothing to split spatially
    ktp = -(-kt_total // n_parts) if split_spatial else kt_total
    covered = st * (ktp * n_parts if split_spatial else kt_total)
    needs_mask = covered != s

    nbt = nbp // bt
    grid = (n_parts, nbt, ktp)

    if split_spatial:
        if n_parts * ktp == kt_total:
            def in_index(p, n, k, _ktp=ktp):
                return (n, 0, p * _ktp + k, 0)
        else:
            # Odd tile count: clamp the (fully masked) overflow tile in bounds.
            def in_index(p, n, k, _ktp=ktp, _last=kt_total - 1):
                return (n, 0, jnp.minimum(p * _ktp + k, _last), 0)
    else:
        def in_index(p, n, k, _nbt=nbt):
            return (p * _nbt + n, 0, k, 0)

    def out_index(p, n, k):
        return (p, 0, 0)

    kernel = functools.partial(_dice_dense_kernel, st=st, s_total=s, ktp=ktp,
                               split_spatial=split_spatial, needs_mask=needs_mask)

    block_in = (bt, c, st, lane)
    num_p, den_p = pl.pallas_call(
        kernel,
        out_shape=(jax.ShapeDtypeStruct((n_parts, c, lane), jnp.float32),
                   jax.ShapeDtypeStruct((n_parts, c, lane), jnp.float32)),
        grid_spec=pltpu.PrefetchScalarGridSpec(
            num_scalar_prefetch=0,
            grid=grid,
            in_specs=[pl.BlockSpec(block_in, in_index),
                      pl.BlockSpec(block_in, in_index)],
            out_specs=(pl.BlockSpec((None, c, lane), out_index),
                       pl.BlockSpec((None, c, lane), out_index)),
        ),
        compiler_params=pltpu.CompilerParams(
            dimension_semantics=("parallel", "arbitrary", "arbitrary"),
            vmem_limit_bytes=vmem_limit,
        ),
    )(x4, y4)
    # Tiny epilogue: cross-partition + cross-lane reduction in plain JAX.
    return jnp.sum(num_p, axis=(0, 2)), jnp.sum(den_p, axis=(0, 2))


def _lane_partial_sums(x3, y3, p_req, max_lane_block, vmem_limit, budget):
    """Per-channel partial sums for the unpadded (N, C, K) layout (K % 128 != 0)."""
    n_batch, c, k_total = x3.shape
    x_isz = jnp.dtype(x3.dtype).itemsize
    y_isz = jnp.dtype(y3.dtype).itemsize

    # Split over batch across cores when it divides; otherwise run one partition
    # (this path only triggers when the flattened spatial size is not 128-aligned).
    if p_req > 1 and n_batch % p_req == 0:
        n_parts, nbp = p_req, n_batch // p_req
    else:
        n_parts, nbp = 1, n_batch

    n_chunks = -(-k_total // _LANE)
    c_pad = -(-c // 16) * 16                     # sublane-padding headroom for small C
    per_elem = 2 * (x_isz + y_isz) + 12
    unit_bytes = c_pad * _LANE * per_elem
    max_chunks = max(1, budget // unit_bytes)

    chunk_cap = (n_chunks if max_lane_block is None
                 else max(1, min(n_chunks, int(max_lane_block) // _LANE)))
    if chunk_cap >= n_chunks and max_chunks >= n_chunks:
        ktb = k_total                            # full flattened axis, no lane mask
        bt = _largest_divisor_leq(nbp, max(1, max_chunks // n_chunks))
    else:
        bt = 1
        ktb = max(1, min(chunk_cap, max_chunks)) * _LANE
    kt = -(-k_total // ktb)
    needs_mask = kt * ktb != k_total
    nbt = nbp // bt
    grid = (n_parts, nbt, kt)

    def in_index(p, n, k, _nbt=nbt):
        return (p * _nbt + n, 0, k)

    def out_index(p, n, k):
        return (p, 0, 0)

    kernel = functools.partial(_dice_lane_kernel, ktb=ktb, k_total=k_total,
                               kt=kt, needs_mask=needs_mask)

    block_in = (bt, c, ktb)
    num_p, den_p = pl.pallas_call(
        kernel,
        out_shape=(jax.ShapeDtypeStruct((n_parts, 1, c), jnp.float32),
                   jax.ShapeDtypeStruct((n_parts, 1, c), jnp.float32)),
        grid_spec=pltpu.PrefetchScalarGridSpec(
            num_scalar_prefetch=0,
            grid=grid,
            in_specs=[pl.BlockSpec(block_in, in_index),
                      pl.BlockSpec(block_in, in_index)],
            out_specs=(pl.BlockSpec((None, 1, c), out_index),
                       pl.BlockSpec((None, 1, c), out_index)),
        ),
        compiler_params=pltpu.CompilerParams(
            dimension_semantics=("parallel", "arbitrary", "arbitrary"),
            vmem_limit_bytes=vmem_limit,
        ),
    )(x3, y3)
    return jnp.sum(num_p, axis=(0, 1)), jnp.sum(den_p, axis=(0, 1))


def _dice_partial_sums(inp, tgt, num_partitions=None,
                       max_rows_per_block=None, max_lane_block=None):
    assert inp.shape == tgt.shape, "input/target shapes must match"
    assert inp.ndim >= 2, "expected (N, C, ...) inputs"
    n_batch, c = inp.shape[0], inp.shape[1]
    k_total = 1
    for d in inp.shape[2:]:
        k_total *= d

    p_req = _num_tensorcores() if num_partitions is None else max(1, int(num_partitions))
    vmem_limit, budget = _vmem_limits()

    if k_total % _LANE == 0:
        s = k_total // _LANE
        # Free view of the contiguous NCHW... tensor (no transpose, no pad).
        x4 = inp.reshape(n_batch, c, s, _LANE)
        y4 = tgt.reshape(n_batch, c, s, _LANE)
        return _dense_partial_sums(x4, y4, p_req, max_rows_per_block,
                                   vmem_limit, budget)
    # Ragged flattened spatial size: stream the unpadded layout and mask the
    # final partial 128-lane chunk in-kernel (avoids a jnp.pad copy pass).
    x3 = inp.reshape(n_batch, c, k_total)
    y3 = tgt.reshape(n_batch, c, k_total)
    return _lane_partial_sums(x3, y3, p_req, max_lane_block, vmem_limit, budget)


def sorensen_dice_loss(inp, tgt, weight=None, channelwise=True, eps=1e-6,
                       num_partitions=None, max_rows_per_block=None,
                       max_lane_block=None):
    """Matches inferno SorensenDiceLoss.forward for (N, C, ...) inputs."""
    num_c, den_c = _dice_partial_sums(inp, tgt, num_partitions=num_partitions,
                                      max_rows_per_block=max_rows_per_block,
                                      max_lane_block=max_lane_block)
    if channelwise:
        cw = -2.0 * (num_c / jnp.maximum(den_c, eps))
        if weight is not None:
            cw = jnp.asarray(weight, jnp.float32).reshape(-1) * cw
        return jnp.sum(cw)
    # Joint over all channels; weight is ignored (as in the PyTorch module).
    num_t = jnp.sum(num_c)
    den_t = jnp.sum(den_c)
    return -2.0 * (num_t / jnp.maximum(den_t, eps))


# --------------------------------------------------------------------------- #
# Pure-JAX reference (for correctness asserts only)
# --------------------------------------------------------------------------- #
def _reference(inp, tgt, weight=None, channelwise=True, eps=1e-6):
    x = inp.astype(jnp.float32)
    y = tgt.astype(jnp.float32)
    if not channelwise:
        num = jnp.sum(x * y)
        den = jnp.sum(x * x) + jnp.sum(y * y)
        return -2.0 * (num / jnp.maximum(den, eps))
    c = inp.shape[1]
    xf = jnp.moveaxis(x, 1, 0).reshape(c, -1)
    yf = jnp.moveaxis(y, 1, 0).reshape(c, -1)
    num = jnp.sum(xf * yf, axis=-1)
    den = jnp.sum(xf * xf, axis=-1) + jnp.sum(yf * yf, axis=-1)
    cw = -2.0 * num / jnp.maximum(den, eps)
    if weight is not None:
        cw = jnp.asarray(weight, jnp.float32).reshape(-1) * cw
    return jnp.sum(cw)


if __name__ == "__main__":
    key = jax.random.PRNGKey(0)
    k1, k2, k3, k4, k5, k6 = jax.random.split(key, 6)

    N, C, H, W = 2, 4, 16, 16
    x = jax.random.uniform(k1, (N, C, H, W), jnp.float32)
    t = (jax.random.uniform(k2, (N, C, H, W), jnp.float32) > 0.5).astype(jnp.float32)
    weight = (jnp.arange(C, dtype=jnp.float32) + 1.0) / C

    # 1) channelwise + class weights (auto tiling / auto partitioning).
    loss = jax.block_until_ready(sorensen_dice_loss(x, t, weight=weight))
    ref = _reference(x, t, weight=weight)
    assert jnp.allclose(loss, ref, rtol=1e-5, atol=1e-5), (loss, ref)

    # 2) joint over all channels (channelwise=False).
    lj = jax.block_until_ready(sorensen_dice_loss(x, t, channelwise=False))
    rj = _reference(x, t, channelwise=False)
    assert jnp.allclose(lj, rj, rtol=1e-5, atol=1e-5), (lj, rj)

    # 3) multi-tile reduction with a ragged (masked) final sublane tile plus the
    #    spatial-axis partition fallback (odd batch, forced 2 partitions).
    x2 = jax.random.uniform(k3, (3, 4, 48, 48), jnp.float32)
    t2 = (jax.random.uniform(k4, (3, 4, 48, 48), jnp.float32) > 0.5).astype(jnp.float32)
    l2 = jax.block_until_ready(sorensen_dice_loss(
        x2, t2, weight=weight, num_partitions=2, max_rows_per_block=8))
    r2 = _reference(x2, t2, weight=weight)
    assert jnp.allclose(l2, r2, rtol=1e-5, atol=1e-5), (l2, r2)

    # 4) bf16 inputs streamed at native width, f32 accumulation.
    lb = jax.block_until_ready(sorensen_dice_loss(
        x.astype(jnp.bfloat16), t.astype(jnp.bfloat16), weight=weight))
    rb = _reference(x.astype(jnp.bfloat16), t.astype(jnp.bfloat16), weight=weight)
    assert jnp.allclose(lb, rb, rtol=1e-3, atol=1e-3), (lb, rb)

    # 5) ragged-lane path: flattened spatial 20*20=400 is not 128-aligned; no
    #    padding copies, final partial 128-lane chunk is masked in-kernel.
    x3 = jax.random.uniform(k5, (2, 4, 20, 20), jnp.float32)
    t3 = (jax.random.uniform(k6, (2, 4, 20, 20), jnp.float32) > 0.5).astype(jnp.float32)
    l3 = jax.block_until_ready(sorensen_dice_loss(
        x3, t3, weight=weight, max_lane_block=128))
    r3 = _reference(x3, t3, weight=weight)
    assert jnp.allclose(l3, r3, rtol=1e-5, atol=1e-5), (l3, r3)

    # 6) ragged-lane path, tiny spatial (K < 128): single full-extent block.
    x5 = jax.random.uniform(k1, (2, 3, 8, 8), jnp.float32)
    t5 = (jax.random.uniform(k2, (2, 3, 8, 8), jnp.float32) > 0.5).astype(jnp.float32)
    l5 = jax.block_until_ready(sorensen_dice_loss(x5, t5, channelwise=True))
    r5 = _reference(x5, t5, channelwise=True)
    assert jnp.allclose(l5, r5, rtol=1e-5, atol=1e-5), (l5, r5)

    print("KERNEL_OK")
</pallas_src>

<mosaic_0001>
module attributes {stable_mosaic.version = 11 : i64} {
  func.func @_dice_dense_kernel(%arg0: i32, %arg1: i32, %arg2: i32, %arg3: memref<1x4x2x128xf32, #tpu.memory_space<vmem>>, %arg4: memref<1x4x2x128xf32, #tpu.memory_space<vmem>>, %arg5: memref<1x4x128xf32, #tpu.memory_space<vmem>>, %arg6: memref<1x4x128xf32, #tpu.memory_space<vmem>>) attributes {dimension_semantics = [#tpu.dimension_semantics<parallel>, #tpu.dimension_semantics<arbitrary>, #tpu.dimension_semantics<arbitrary>], iteration_bounds = array<i64: 2, 1, 1>, scalar_prefetch = 0 : i64, scratch_operands = 0 : i64, tpu.core_type = #tpu.core_type<tc>, window_params = [{transform_indices = @transform_0, window_bounds = array<i64: 1, 4, 2, 128>}, {transform_indices = @transform_1, window_bounds = array<i64: 1, 4, 2, 128>}, {transform_indices = @transform_2, window_bounds = array<i64: 1, 4, 128>}, {transform_indices = @transform_3, window_bounds = array<i64: 1, 4, 128>}]} {
    %c0_i32 = arith.constant 0 : i32
    %0 = arith.cmpi eq, %arg1, %c0_i32 : i32
    %c0_i32_0 = arith.constant 0 : i32
    %1 = arith.cmpi eq, %arg2, %c0_i32_0 : i32
    %2 = arith.andi %0, %1 : i1
    %3 = arith.extui %2 : i1 to i32
    %c0_i32_1 = arith.constant 0 : i32
    %4 = arith.cmpi ne, %3, %c0_i32_1 : i32
    scf.if %4 {
      %cst_22 = arith.constant 0.000000e+00 : f32
      %25 = vector.broadcast %cst_22 : f32 to vector<4x128xf32>
      %c0_23 = arith.constant 0 : index
      %c0_24 = arith.constant 0 : index
      %c0_25 = arith.constant 0 : index
      %26 = vector.load %arg5[%c0_23, %c0_24, %c0_25] : memref<1x4x128xf32, #tpu.memory_space<vmem>>, vector<1x4x128xf32>
      %27 = vector.shape_cast %26 : vector<1x4x128xf32> to vector<4x128xf32>
      %28 = vector.shape_cast %25 : vector<4x128xf32> to vector<1x4x128xf32>
      tpu.vector_store %arg5[%c0_23, %c0_24, %c0_25], %28 {strides = array<i32>} : memref<1x4x128xf32, #tpu.memory_space<vmem>>, vector<1x4x128xf32>,
      %cst_26 = arith.constant 0.000000e+00 : f32
      %29 = vector.broadcast %cst_26 : f32 to vector<4x128xf32>
      %c0_27 = arith.constant 0 : index
      %c0_28 = arith.constant 0 : index
      %c0_29 = arith.constant 0 : index
      %30 = vector.load %arg6[%c0_27, %c0_28, %c0_29] : memref<1x4x128xf32, #tpu.memory_space<vmem>>, vector<1x4x128xf32>
      %31 = vector.shape_cast %30 : vector<1x4x128xf32> to vector<4x128xf32>
      %32 = vector.shape_cast %29 : vector<4x128xf32> to vector<1x4x128xf32>
      tpu.vector_store %arg6[%c0_27, %c0_28, %c0_29], %32 {strides = array<i32>} : memref<1x4x128xf32, #tpu.memory_space<vmem>>, vector<1x4x128xf32>,
    } else {
    }
    %c0 = arith.constant 0 : index
    %c0_2 = arith.constant 0 : index
    %c0_3 = arith.constant 0 : index
    %c0_4 = arith.constant 0 : index
    %5 = vector.load %arg3[%c0, %c0_2, %c0_3, %c0_4] : memref<1x4x2x128xf32, #tpu.memory_space<vmem>>, vector<1x4x2x128xf32>
    %c0_5 = arith.constant 0 : index
    %c0_6 = arith.constant 0 : index
    %c0_7 = arith.constant 0 : index
    %c0_8 = arith.constant 0 : index
    %6 = vector.load %arg4[%c0_5, %c0_6, %c0_7, %c0_8] : memref<1x4x2x128xf32, #tpu.memory_space<vmem>>, vector<1x4x2x128xf32>
    %c0_9 = arith.constant 0 : index
    %c0_10 = arith.constant 0 : index
    %c0_11 = arith.constant 0 : index
    %7 = vector.load %arg5[%c0_9, %c0_10, %c0_11] : memref<1x4x128xf32, #tpu.memory_space<vmem>>, vector<1x4x128xf32>
    %8 = vector.shape_cast %7 : vector<1x4x128xf32> to vector<4x128xf32>
    %9 = arith.mulf %5, %6 : vector<1x4x2x128xf32>
    %cst = arith.constant dense<0.000000e+00> : vector<4x128xf32>
    %10 = vector.multi_reduction <add>, %9, %cst [0, 2] : vector<1x4x2x128xf32> to vector<4x128xf32>
    %11 = arith.addf %8, %10 : vector<4x128xf32>
    %c0_12 = arith.constant 0 : index
    %c0_13 = arith.constant 0 : index
    %c0_14 = arith.constant 0 : index
    %12 = vector.load %arg5[%c0_12, %c0_13, %c0_14] : memref<1x4x128xf32, #tpu.memory_space<vmem>>, vector<1x4x128xf32>
    %13 = vector.shape_cast %12 : vector<1x4x128xf32> to vector<4x128xf32>
    %14 = vector.shape_cast %11 : vector<4x128xf32> to vector<1x4x128xf32>
    tpu.vector_store %arg5[%c0_12, %c0_13, %c0_14], %14 {strides = array<i32>} : memref<1x4x128xf32, #tpu.memory_space<vmem>>, vector<1x4x128xf32>,
    %c0_15 = arith.constant 0 : index
    %c0_16 = arith.constant 0 : index
    %c0_17 = arith.constant 0 : index
    %15 = vector.load %arg6[%c0_15, %c0_16, %c0_17] : memref<1x4x128xf32, #tpu.memory_space<vmem>>, vector<1x4x128xf32>
    %16 = vector.shape_cast %15 : vector<1x4x128xf32> to vector<4x128xf32>
    %17 = arith.mulf %5, %5 : vector<1x4x2x128xf32>
    %18 = arith.mulf %6, %6 : vector<1x4x2x128xf32>
    %19 = arith.addf %17, %18 : vector<1x4x2x128xf32>
    %cst_18 = arith.constant dense<0.000000e+00> : vector<4x128xf32>
    %20 = vector.multi_reduction <add>, %19, %cst_18 [0, 2] : vector<1x4x2x128xf32> to vector<4x128xf32>
    %21 = arith.addf %16, %20 : vector<4x128xf32>
    %c0_19 = arith.constant 0 : index
    %c0_20 = arith.constant 0 : index
    %c0_21 = arith.constant 0 : index
    %22 = vector.load %arg6[%c0_19, %c0_20, %c0_21] : memref<1x4x128xf32, #tpu.memory_space<vmem>>, vector<1x4x128xf32>
    %23 = vector.shape_cast %22 : vector<1x4x128xf32> to vector<4x128xf32>
    %24 = vector.shape_cast %21 : vector<4x128xf32> to vector<1x4x128xf32>
    tpu.vector_store %arg6[%c0_19, %c0_20, %c0_21], %24 {strides = array<i32>} : memref<1x4x128xf32, #tpu.memory_space<vmem>>, vector<1x4x128xf32>,
    return
  }
  func.func @transform_0(%arg0: i32, %arg1: i32, %arg2: i32) -> (i32, i32, i32, i32) {
    %c1_i32 = arith.constant 1 : i32
    %0 = arith.muli %arg0, %c1_i32 : i32
    %1 = arith.addi %0, %arg1 : i32
    %c0_i32 = arith.constant 0 : i32
    %c0_i32_0 = arith.constant 0 : i32
    %c0_i32_1 = arith.constant 0 : i32
    return %1, %c0_i32, %arg2, %c0_i32_0 : i32, i32, i32, i32
  }
  func.func @transform_1(%arg0: i32, %arg1: i32, %arg2: i32) -> (i32, i32, i32, i32) {
    %c1_i32 = arith.constant 1 : i32
    %0 = arith.muli %arg0, %c1_i32 : i32
    %1 = arith.addi %0, %arg1 : i32
    %c0_i32 = arith.constant 0 : i32
    %c0_i32_0 = arith.constant 0 : i32
    %c0_i32_1 = arith.constant 0 : i32
    return %1, %c0_i32, %arg2, %c0_i32_0 : i32, i32, i32, i32
  }
  func.func @transform_2(%arg0: i32, %arg1: i32, %arg2: i32) -> (i32, i32, i32) {
    %c0_i32 = arith.constant 0 : i32
    %c0_i32_0 = arith.constant 0 : i32
    %c0_i32_1 = arith.constant 0 : i32
    return %arg0, %c0_i32, %c0_i32_0 : i32, i32, i32
  }
  func.func @transform_3(%arg0: i32, %arg1: i32, %arg2: i32) -> (i32, i32, i32) {
    %c0_i32 = arith.constant 0 : i32
    %c0_i32_0 = arith.constant 0 : i32
    %c0_i32_1 = arith.constant 0 : i32
    return %arg0, %c0_i32, %c0_i32_0 : i32, i32, i32
  }
}

</mosaic_0001>

<llo_original>
// kernel: tpu_custom_call.1
$region0: #{tpu_custom_call.1}
  #allocation0 [shape = 'u32[]', space=smem, size = 0x4, offset = 0x4, fixed_abs, tag = 'smem constant byte address 0x4 - core index']
  #allocation1 [shape = 'u32[72,128]{1,0:T(1,128)}', space=vmem, size = 0x9000, scoped, tag = 'internal scratch']
  %s0 = inlined_call_operand.hbm [shape: f32[2,4,2,128], index: 0, kind: input, shape index: {}]
  %s1 = inlined_call_operand.hbm [shape: f32[2,4,2,128], index: 1, kind: input, shape index: {}]
  %s2 = inlined_call_operand.hbm [shape: f32[2,4,128], index: 2, kind: output, shape index: {0}]
  %s3 = inlined_call_operand.hbm [shape: f32[2,4,128], index: 3, kind: output, shape index: {1}]
  %4 = xla_tuple %s2, %s3
  %s5 = sld [smem:[#allocation0]]
  $region61: #{tpu_custom_call.1} parent=0
    _
  %s7 = ssub.s32 1, %s5
  %s8 = scalar_select 0, %s7, %s5
  $region1: #{tpu_custom_call.1} parent=0
    #allocation2 [shape = 'u8[8192]{0}', space=vmem, size = 0x2000, scoped, tag = 'input window, operand 0']
    #allocation3 [shape = 's32[2]{0}', space=sflag, size = 0x8, scoped, tag = 'scoped memory for tpu_custom_call.1']
    #allocation4 [shape = 's32[2]{0}', space=sflag, size = 0x8, scoped, tag = 'scoped memory for tpu_custom_call.1']
    #allocation5 [shape = 'u8[8192]{0}', space=vmem, size = 0x2000, scoped, tag = 'input window, operand 1']
    #allocation6 [shape = 's32[2]{0}', space=sflag, size = 0x8, scoped, tag = 'scoped memory for tpu_custom_call.1']
    #allocation7 [shape = 'u8[4096]{0}', space=vmem, size = 0x1000, scoped, tag = 'output window, operand 0']
    #allocation8 [shape = 'u8[4096]{0}', space=vmem, size = 0x1000, scoped, tag = 'output window, operand 1']
    #allocation9 [shape = 's32[2]{0}', space=sflag, size = 0x8, scoped, tag = 'scoped memory for tpu_custom_call.1']
    %9 = vsyncpa [#allocation3], 0
    %s10 = scalar_lea.sflag [#allocation3], 1
    %11 = vsyncpa %s10, 0
    %12 = vsyncpa [#allocation6], 0
    %s13 = scalar_lea.sflag [#allocation6], 1
    %14 = vsyncpa %s13, 0
    %15 = vsyncpa [#allocation4], 0
    %s16 = scalar_lea.sflag [#allocation4], 1
    %17 = vsyncpa %s16, 0
    %18 = vsyncpa [#allocation9], 0
    %s19 = scalar_lea.sflag [#allocation9], 1
    %20 = vsyncpa %s19, 0
    loop: start=0, step=1, limit=4
    $region2: #{tpu_custom_call.1} parent=1 // loop_pre_header
      _
    $region3: #{tpu_custom_call.1} parent=1 // loop_header
      %s22 = sphi 0, %s26
      %p23 = scmp.ge.s32.totalorder %s22, 4
      %s29 = sphi 0, %s48
      %s30 = sphi 0, %s44
      %s31 = sphi 0, %s40
      %s32 = sphi 0, %s29
      %s33 = sphi 0, %s30
      %s34 = sphi 0, %s31
      %s35 = sphi 0, %s32
      %s36 = sphi 0, %s33
      %s37 = sphi 0, %s34
      %s55 = sphi 0, %s57
      %s58 = sphi 0, %s55
      %s59 = sphi 0, %s58
      %s75 = sphi 0, %s59
      %s85 = sphi 0, %s87
      %s88 = sphi 0, %s85
      %s89 = sphi 0, %s88
      %s105 = sphi 0, %s89
      %s111 = sphi 0, %s113
      %s114 = sphi 0, %s111
      %s115 = sphi 0, %s114
      %s131 = sphi 0, %s115
      %s137 = sphi 0, %s139
      %s140 = sphi 0, %s137
      %s141 = sphi 0, %s140
      %s157 = sphi 0, %s141
    $region4: #{tpu_custom_call.1} parent=1 // loop_header_branch
      %25 = sbr.rel (%p23) target = $region8
    $region5: #{tpu_custom_call.1} parent=1 // loop_body
      %s27 = ssub.s32 %s22, 1
      %s28 = ssub.s32 %s22, 2
      %s38 = sadd.s32 1, %s31
      %p39 = scmp.ge.s32.totalorder %s38, 1
      %s40 = scalar_select %p39, 0, %s38
      %s41 = sadd.s32 1, %s30
      %s42 = scalar_select %p39, %s41, %s30
      %p43 = scmp.ge.s32.totalorder %s42, 1
      %s44 = scalar_select %p43, 0, %s42
      %s45 = sadd.s32 1, %s29
      %s46 = scalar_select %p43, %s45, %s29
      %p47 = scmp.ge.s32.totalorder %s46, 2
      %s48 = scalar_select %p47, 0, %s46
      %s49 = sadd.s32 %s29, %s30
      %s50 = sadd.s32 %s48, %s44
      %s51 = ssub.s32 %s49, %s50
      %s52 = ssub.s32 %s31, %s40
      %s53 = sor.u32 %s51, %s52
      %p54 = scmp.eq.s32.totalorder %s53, 0
      %s56 = sadd.s32 %s55, 1
      %s57 = scalar_select %p54, %s55, %s56
      %p60 = pneg %p54
      %p61 = scmp.eq.s32.totalorder %s22, 1
      %p62 = por %p60, %p61
      %p63 = scmp.ne.s32.totalorder %s55, %s58
      %p64 = scmp.eq.s32.totalorder %s22, 0
      %p65 = por %p63, %p64
      %p66 = scmp.ne.s32.totalorder %s55, %s58
      %p67 = scmp.eq.s32.totalorder %s27, 1
      %p68 = por %p66, %p67
      %p69 = scmp.ne.s32.totalorder %s58, %s59
      %p70 = scmp.eq.s32.totalorder %s27, 0
      %p71 = por %p69, %p70
      %p72 = scmp.ne.s32.totalorder %s58, %s59
      %p73 = scmp.eq.s32.totalorder %s28, 1
      %p74 = por %p72, %p73
      %p76 = scmp.ne.s32.totalorder %s59, %s75
      %p77 = scmp.eq.s32.totalorder %s28, 0
      %p78 = por %p76, %p77
      %s79 = sadd.s32 %s29, %s30
      %s80 = sadd.s32 %s48, %s44
      %s81 = ssub.s32 %s79, %s80
      %s82 = ssub.s32 %s31, %s40
      %s83 = sor.u32 %s81, %s82
      %p84 = scmp.eq.s32.totalorder %s83, 0
      %s86 = sadd.s32 %s85, 1
      %s87 = scalar_select %p84, %s85, %s86
      %p90 = pneg %p84
      %p91 = scmp.eq.s32.totalorder %s22, 1
      %p92 = por %p90, %p91
      %p93 = scmp.ne.s32.totalorder %s85, %s88
      %p94 = scmp.eq.s32.totalorder %s22, 0
      %p95 = por %p93, %p94
      %p96 = scmp.ne.s32.totalorder %s85, %s88
      %p97 = scmp.eq.s32.totalorder %s27, 1
      %p98 = por %p96, %p97
      %p99 = scmp.ne.s32.totalorder %s88, %s89
      %p100 = scmp.eq.s32.totalorder %s27, 0
      %p101 = por %p99, %p100
      %p102 = scmp.ne.s32.totalorder %s88, %s89
      %p103 = scmp.eq.s32.totalorder %s28, 1
      %p104 = por %p102, %p103
      %p106 = scmp.ne.s32.totalorder %s89, %s105
      %p107 = scmp.eq.s32.totalorder %s28, 0
      %p108 = por %p106, %p107
      %s109 = ssub.s32 %s29, %s48
      %p110 = scmp.eq.s32.totalorder %s109, 0
      %s112 = sadd.s32 %s111, 1
      %s113 = scalar_select %p110, %s111, %s112
      %p116 = pneg %p110
      %p117 = scmp.eq.s32.totalorder %s22, 1
      %p118 = por %p116, %p117
      %p119 = scmp.ne.s32.totalorder %s111, %s114
      %p120 = scmp.eq.s32.totalorder %s22, 0
      %p121 = por %p119, %p120
      %p122 = scmp.ne.s32.totalorder %s111, %s114
      %p123 = scmp.eq.s32.totalorder %s27, 1
      %p124 = por %p122, %p123
      %p125 = scmp.ne.s32.totalorder %s114, %s115
      %p126 = scmp.eq.s32.totalorder %s27, 0
      %p127 = por %p125, %p126
      %p128 = scmp.ne.s32.totalorder %s114, %s115
      %p129 = scmp.eq.s32.totalorder %s28, 1
      %p130 = por %p128, %p129
      %p132 = scmp.ne.s32.totalorder %s115, %s131
      %p133 = scmp.eq.s32.totalorder %s28, 0
      %p134 = por %p132, %p133
      %s135 = ssub.s32 %s29, %s48
      %p136 = scmp.eq.s32.totalorder %s135, 0
      %s138 = sadd.s32 %s137, 1
      %s139 = scalar_select %p136, %s137, %s138
      %p142 = pneg %p136
      %p143 = scmp.eq.s32.totalorder %s22, 1
      %p144 = por %p142, %p143
      %p145 = scmp.ne.s32.totalorder %s137, %s140
      %p146 = scmp.eq.s32.totalorder %s22, 0
      %p147 = por %p145, %p146
      %p148 = scmp.ne.s32.totalorder %s137, %s140
      %p149 = scmp.eq.s32.totalorder %s27, 1
      %p150 = por %p148, %p149
      %p151 = scmp.ne.s32.totalorder %s140, %s141
      %p152 = scmp.eq.s32.totalorder %s27, 0
      %p153 = por %p151, %p152
      %p154 = scmp.ne.s32.totalorder %s140, %s141
      %p155 = scmp.eq.s32.totalorder %s28, 1
      %p156 = por %p154, %p155
      %p158 = scmp.ne.s32.totalorder %s141, %s157
      %p159 = scmp.eq.s32.totalorder %s28, 0
      %p160 = por %p158, %p159
      %p161 = scmp.le.s32.totalorder 1, %s22
      %p162 = scmp.lt.s32.totalorder %s22, 3
      %p163 = pnand %p161, %p162
      %p164 = pneg %p163
      // Predicated region
      $region9: #{tpu_custom_call.1} parent=5 // pred_check
        _
      $region10: #{tpu_custom_call.1} parent=5 // pred_check_branch
        %166 = sbr.rel (%p163) target = $region12
      $region11: #{tpu_custom_call.1} parent=5 // pred_region
        %s167 = ssub.s32 %s22, 1
      $region12: #{tpu_custom_call.1} parent=5 // pred_fallthru
        _
      %p168 = scmp.lt.s32.totalorder %s22, 2
      // Predicated region
      $region13: #{tpu_custom_call.1} parent=5 // pred_check
        %p169 = pneg %p168
      $region14: #{tpu_custom_call.1} parent=5 // pred_check_branch
        %171 = sbr.rel (%p169) target = $region16
      $region15: #{tpu_custom_call.1} parent=5 // pred_region
        // Predicated region
        $region17: #{tpu_custom_call.1} parent=15 // pred_check
          %p172 = pneg %p65
        $region18: #{tpu_custom_call.1} parent=15 // pred_check_branch
          %174 = sbr.rel (%p172) target = $region20
        $region19: #{tpu_custom_call.1} parent=15 // pred_region
          %s175 = sand.u32 %s55, 1
          %s176 = scalar_lea.sflag [#allocation3], %s175
          %s177 = sand.u32 %s55, 1
          %s178 = smul.addr %s177, 8
          %s179 = scalar_lea.vmem [#allocation2], %s178
          %s180 = sadd.s32 %s29, %s30
          %182 = vsyncadd %s176, 0
          %s183 = smul.addr %s180, 4
          %s184 = sadd.s32 %s31, %s183
          %s185 = smul.addr %s184, 2
          %s186 = scalar_lea.hbm %s0, %s185
          %s187 = sshll.u32 %s186, 4
          %s188 = int_to_ptr.hbm [resolvable:$true] %s187
          %s189 = sshll.u32 %s179, 4
          %s190 = int_to_ptr.vmem [resolvable:$true] %s189
          %195 = dma.hbm_to_vmem [thread:$0]  %s188, 128, %s190, %s176, 32, 32, 2
        $region20: #{tpu_custom_call.1} parent=15 // pred_fallthru
          _
        // Predicated region
        $region21: #{tpu_custom_call.1} parent=15 // pred_check
          %p196 = pneg %p95
        $region22: #{tpu_custom_call.1} parent=15 // pred_check_branch
          %198 = sbr.rel (%p196) target = $region24
        $region23: #{tpu_custom_call.1} parent=15 // pred_region
          %s199 = sand.u32 %s85, 1
          %s200 = scalar_lea.sflag [#allocation6], %s199
          %s201 = sand.u32 %s85, 1
          %s202 = smul.addr %s201, 8
          %s203 = scalar_lea.vmem [#allocation5], %s202
          %s204 = sadd.s32 %s29, %s30
          %206 = vsyncadd %s200, 0
          %s207 = smul.addr %s204, 4
          %s208 = sadd.s32 %s31, %s207
          %s209 = smul.addr %s208, 2
          %s210 = scalar_lea.hbm %s1, %s209
          %s211 = sshll.u32 %s210, 4
          %s212 = int_to_ptr.hbm [resolvable:$true] %s211
          %s213 = sshll.u32 %s203, 4
          %s214 = int_to_ptr.vmem [resolvable:$true] %s213
          %219 = dma.hbm_to_vmem [thread:$0]  %s212, 128, %s214, %s200, 32, 32, 2
        $region24: #{tpu_custom_call.1} parent=15 // pred_fallthru
          _
      $region16: #{tpu_custom_call.1} parent=5 // pred_fallthru
        _
      %p220 = scmp.le.s32.totalorder 1, %s22
      %p221 = scmp.lt.s32.totalorder %s22, 3
      %p222 = pnand %p220, %p221
      %p223 = pneg %p222
      // Predicated region
      $region25: #{tpu_custom_call.1} parent=5 // pred_check
        _
      $region26: #{tpu_custom_call.1} parent=5 // pred_check_branch
        %225 = sbr.rel (%p222) target = $region28
      $region27: #{tpu_custom_call.1} parent=5 // pred_region
        %s226 = ssub.s32 %s22, 1
        %s227 = sand.u32 %s58, 1
        %s228 = scalar_lea.sflag [#allocation3], %s227
        %s229 = sand.u32 %s58, 1
        %s230 = smul.addr %s229, 8
        %s231 = scalar_lea.vmem [#allocation2], %s230
        // Predicated region
        $region29: #{tpu_custom_call.1} parent=27 // pred_check
          %p232 = pneg %p71
        $region30: #{tpu_custom_call.1} parent=27 // pred_check_branch
          %234 = sbr.rel (%p232) target = $region32
        $region31: #{tpu_custom_call.1} parent=27 // pred_region
          %236 = dma.done %s228, 128
        $region32: #{tpu_custom_call.1} parent=27 // pred_fallthru
          _
        %s237 = sand.u32 %s88, 1
        %s238 = scalar_lea.sflag [#allocation6], %s237
        %s239 = sand.u32 %s88, 1
        %s240 = smul.addr %s239, 8
        %s241 = scalar_lea.vmem [#allocation5], %s240
        // Predicated region
        $region33: #{tpu_custom_call.1} parent=27 // pred_check
          %p242 = pneg %p101
        $region34: #{tpu_custom_call.1} parent=27 // pred_check_branch
          %244 = sbr.rel (%p242) target = $region36
        $region35: #{tpu_custom_call.1} parent=27 // pred_region
          %246 = dma.done %s238, 128
        $region36: #{tpu_custom_call.1} parent=27 // pred_fallthru
          _
        %s247 = sand.u32 %s58, 1
        %s248 = scalar_lea.sflag [#allocation3], %s247
        %s249 = sand.u32 %s58, 1
        %s250 = smul.addr %s249, 8
        %s251 = scalar_lea.vmem [#allocation2], %s250
        %p252 = pneg %p71
        %p253 = pneg %p68
        %s254 = sand.u32 %s88, 1
        %s255 = scalar_lea.sflag [#allocation6], %s254
        %s256 = sand.u32 %s88, 1
        %s257 = smul.addr %s256, 8
        %s258 = scalar_lea.vmem [#allocation5], %s257
        %p259 = pneg %p101
        %p260 = pneg %p98
        %p261 = pneg %p127
        %p262 = pneg %p124
        %s263 = sand.u32 %s114, 1
        %s264 = scalar_lea.sflag [#allocation4], %s263
        %s265 = sand.u32 %s114, 1
        %s266 = smul.addr %s265, 4
        %s267 = scalar_lea.vmem [#allocation7], %s266
        %p268 = pneg %p153
        %p269 = pneg %p150
        %s270 = sand.u32 %s140, 1
        %s271 = scalar_lea.sflag [#allocation9], %s270
        %s272 = sand.u32 %s140, 1
        %s273 = smul.addr %s272, 4
        %s274 = scalar_lea.vmem [#allocation8], %s273
        %s275 = sadd.s32 %s32, %s33
        %s276 = sadd.s32 %s32, %s33
        %p277 = scmp.eq.s32.totalorder %s33, 0
        %p278 = scmp.eq.s32.totalorder %s34, 0
        %p279 = pnand %p277, %p278
        %p280 = pneg %p279
        // Predicated region
        $region37: #{tpu_custom_call.1} parent=27 // pred_check
          _
        $region38: #{tpu_custom_call.1} parent=27 // pred_check_branch
          %282 = sbr.rel (%p279) target = $region40
        $region39: #{tpu_custom_call.1} parent=27 // pred_region
          %283 = vst [vmem:[%s267] sm:$0xf] 0.0
          %284 = vst [vmem:[%s274] sm:$0xf] 0.0
        $region40: #{tpu_custom_call.1} parent=27 // pred_fallthru
          _
        %v285 = vld [vmem:[%s231] sm:$0x3]
        %v286 = vld [vmem:[%s231 + $0x2] sm:$0x3]
        %v287 = vld [vmem:[%s231 + $0x4] sm:$0x3]
        %v288 = vld [vmem:[%s231 + $0x6] sm:$0x3]
        %v289 = vld [vmem:[%s241] sm:$0x3]
        %v290 = vld [vmem:[%s241 + $0x2] sm:$0x3]
        %v291 = vld [vmem:[%s241 + $0x4] sm:$0x3]
        %v292 = vld [vmem:[%s241 + $0x6] sm:$0x3]
        %v293 = vld [vmem:[%s267] sm:$0xf]
        %v294 = vmul.f32 %v285, %v289
        %v295 = vmul.f32 %v286, %v290
        %v296 = vmul.f32 %v287, %v291
        %v297 = vmul.f32 %v288, %v292
        %vm298 = vcmask 1041408
        %v299 = vsel %vm298, %v294, 0.0
        %v300 = vrot.slane %v299, 4
        %v301 = vadd.f32 %v299, %v300
        %v302 = vrot.slane %v301, 2
        %v303 = vadd.f32 %v301, %v302
        %v304 = vrot.slane %v303, 1
        %v305 = vadd.f32 %v303, %v304
        %v306 = vsel %vm298, %v295, 0.0
        %v307 = vrot.slane %v306, 4
        %v308 = vadd.f32 %v306, %v307
        %v309 = vrot.slane %v308, 2
        %v310 = vadd.f32 %v308, %v309
        %v311 = vrot.slane %v310, 1
        %v312 = vadd.f32 %v310, %v311
        %v313 = vsel %vm298, %v296, 0.0
        %v314 = vrot.slane %v313, 4
        %v315 = vadd.f32 %v313, %v314
        %v316 = vrot.slane %v315, 2
        %v317 = vadd.f32 %v315, %v316
        %v318 = vrot.slane %v317, 1
        %v319 = vadd.f32 %v317, %v318
        %v320 = vsel %vm298, %v297, 0.0
        %v321 = vrot.slane %v320, 4
        %v322 = vadd.f32 %v320, %v321
        %v323 = vrot.slane %v322, 2
        %v324 = vadd.f32 %v322, %v323
        %v325 = vrot.slane %v324, 1
        %v326 = vadd.f32 %v324, %v325
        %vm331 = vcmask 1041409
        %v332 = vsel %vm331, %v312, %v305
        %vm333 = vcmask 1042434
        %v334 = vsel %vm333, %v319, %v332
        %vm335 = vcmask 1043459
        %v336 = vsel %vm335, %v326, %v334
        %v338 = vadd.f32 %v293, %v336
        %339 = vst [vmem:[%s267] sm:$0xf] %v338
        %v340 = vld [vmem:[%s274] sm:$0xf]
        %v341 = vmul.f32 %v285, %v285
        %v342 = vmul.f32 %v286, %v286
        %v343 = vmul.f32 %v287, %v287
        %v344 = vmul.f32 %v288, %v288
        %v345 = vmul.f32 %v289, %v289
        %v346 = vmul.f32 %v290, %v290
        %v347 = vmul.f32 %v291, %v291
        %v348 = vmul.f32 %v292, %v292
        %v349 = vadd.f32 %v341, %v345
        %v350 = vadd.f32 %v342, %v346
        %v351 = vadd.f32 %v343, %v347
        %v352 = vadd.f32 %v344, %v348
        %v353 = vsel %vm298, %v349, 0.0
        %v354 = vrot.slane %v353, 4
        %v355 = vadd.f32 %v353, %v354
        %v356 = vrot.slane %v355, 2
        %v357 = vadd.f32 %v355, %v356
        %v358 = vrot.slane %v357, 1
        %v359 = vadd.f32 %v357, %v358
        %v360 = vsel %vm298, %v350, 0.0
        %v361 = vrot.slane %v360, 4
        %v362 = vadd.f32 %v360, %v361
        %v363 = vrot.slane %v362, 2
        %v364 = vadd.f32 %v362, %v363
        %v365 = vrot.slane %v364, 1
        %v366 = vadd.f32 %v364, %v365
        %v367 = vsel %vm298, %v351, 0.0
        %v368 = vrot.slane %v367, 4
        %v369 = vadd.f32 %v367, %v368
        %v370 = vrot.slane %v369, 2
        %v371 = vadd.f32 %v369, %v370
        %v372 = vrot.slane %v371, 1
        %v373 = vadd.f32 %v371, %v372
        %v374 = vsel %vm298, %v352, 0.0
        %v375 = vrot.slane %v374, 4
        %v376 = vadd.f32 %v374, %v375
        %v377 = vrot.slane %v376, 2
        %v378 = vadd.f32 %v376, %v377
        %v379 = vrot.slane %v378, 1
        %v380 = vadd.f32 %v378, %v379
        %v385 = vsel %vm331, %v366, %v359
        %v386 = vsel %vm333, %v373, %v385
        %v387 = vsel %vm335, %v380, %v386
        %v389 = vadd.f32 %v340, %v387
        %390 = vst [vmem:[%s274] sm:$0xf] %v389
        %s391 = sand.u32 %s114, 1
        %s392 = scalar_lea.sflag [#allocation4], %s391
        %s393 = sand.u32 %s114, 1
        %s394 = smul.addr %s393, 4
        %s395 = scalar_lea.vmem [#allocation7], %s394
        %s396 = sand.u32 %s140, 1
        %s397 = scalar_lea.sflag [#allocation9], %s396
        %s398 = sand.u32 %s140, 1
        %s399 = smul.addr %s398, 4
        %s400 = scalar_lea.vmem [#allocation8], %s399
        // Predicated region
        $region41: #{tpu_custom_call.1} parent=27 // pred_check
          %p401 = pneg %p124
        $region42: #{tpu_custom_call.1} parent=27 // pred_check_branch
          %403 = sbr.rel (%p401) target = $region44
        $region43: #{tpu_custom_call.1} parent=27 // pred_region
          %405 = vsyncadd %s392, 0
          %s406 = smul.addr %s32, 4
          %s407 = scalar_lea.hbm %s2, %s406
          %s409 = sshll.u32 %s395, 4
          %s410 = int_to_ptr.vmem [resolvable:$true] %s409
          %s411 = sshll.u32 %s407, 4
          %s412 = int_to_ptr.hbm [resolvable:$true] %s411
          %414 = dma.vmem_to_hbm [thread:$0]  %s410, 64, %s412, %s392
        $region44: #{tpu_custom_call.1} parent=27 // pred_fallthru
          _
        // Predicated region
        $region45: #{tpu_custom_call.1} parent=27 // pred_check
          %p415 = pneg %p150
        $region46: #{tpu_custom_call.1} parent=27 // pred_check_branch
          %417 = sbr.rel (%p415) target = $region48
        $region47: #{tpu_custom_call.1} parent=27 // pred_region
          %419 = vsyncadd %s397, 0
          %s420 = smul.addr %s32, 4
          %s421 = scalar_lea.hbm %s3, %s420
          %s423 = sshll.u32 %s400, 4
          %s424 = int_to_ptr.vmem [resolvable:$true] %s423
          %s425 = sshll.u32 %s421, 4
          %s426 = int_to_ptr.hbm [resolvable:$true] %s425
          %428 = dma.vmem_to_hbm [thread:$0]  %s424, 64, %s426, %s397
        $region48: #{tpu_custom_call.1} parent=27 // pred_fallthru
          _
      $region28: #{tpu_custom_call.1} parent=5 // pred_fallthru
        _
      %p429 = scmp.le.s32.totalorder 2, %s22
      // Predicated region
      $region49: #{tpu_custom_call.1} parent=5 // pred_check
        %p430 = pneg %p429
      $region50: #{tpu_custom_call.1} parent=5 // pred_check_branch
        %432 = sbr.rel (%p430) target = $region52
      $region51: #{tpu_custom_call.1} parent=5 // pred_region
        %s433 = ssub.s32 %s22, 2
        // Predicated region
        $region53: #{tpu_custom_call.1} parent=51 // pred_check
          %p434 = pneg %p130
        $region54: #{tpu_custom_call.1} parent=51 // pred_check_branch
          %436 = sbr.rel (%p434) target = $region56
        $region55: #{tpu_custom_call.1} parent=51 // pred_region
          %s437 = sand.u32 %s115, 1
          %s438 = scalar_lea.sflag [#allocation4], %s437
          %s439 = sand.u32 %s115, 1
          %s440 = smul.addr %s439, 4
          %s441 = scalar_lea.vmem [#allocation7], %s440
          %443 = dma.done %s438, 64
        $region56: #{tpu_custom_call.1} parent=51 // pred_fallthru
          _
        // Predicated region
        $region57: #{tpu_custom_call.1} parent=51 // pred_check
          %p444 = pneg %p156
        $region58: #{tpu_custom_call.1} parent=51 // pred_check_branch
          %446 = sbr.rel (%p444) target = $region60
        $region59: #{tpu_custom_call.1} parent=51 // pred_region
          %s447 = sand.u32 %s141, 1
          %s448 = scalar_lea.sflag [#allocation9], %s447
          %s449 = sand.u32 %s141, 1
          %s450 = smul.addr %s449, 4
          %s451 = scalar_lea.vmem [#allocation8], %s450
          %453 = dma.done %s448, 64
        $region60: #{tpu_custom_call.1} parent=51 // pred_fallthru
          _
      $region52: #{tpu_custom_call.1} parent=5 // pred_fallthru
        _
    $region6: #{tpu_custom_call.1} parent=1 // loop_footer
      %s26 = sadd.s32 1, %s22
    $region7: #{tpu_custom_call.1} parent=1 // loop_footer_branch
      %21 = sbr.rel target = $region3
    $region8: #{tpu_custom_call.1} parent=1 // loop_exit
      _
    %454 = vsyncpa [#allocation3], 1
    %s455 = scalar_lea.sflag [#allocation3], 1
    %456 = vsyncpa %s455, 1
    %457 = vsyncpa [#allocation6], 1
    %s458 = scalar_lea.sflag [#allocation6], 1
    %459 = vsyncpa %s458, 1
    %460 = vsyncpa [#allocation4], 1
    %s461 = scalar_lea.sflag [#allocation4], 1
    %462 = vsyncpa %s461, 1
    %463 = vsyncpa [#allocation9], 1
    %s464 = scalar_lea.sflag [#allocation9], 1
    %465 = vsyncpa %s464, 1

</llo_original>
